<compile_context>
chip_gen: v7x
topology: tpu7x:2x2x1
jax: 0.10.0
libtpu: 0.0.40
codegen_flags: <defaults>
</compile_context>

<pallas_src>
import functools

import jax
import jax.numpy as jnp
from jax.experimental import pallas as pl
from jax.experimental.pallas import tpu as pltpu


def _head_classifier_kernel(x_ref, w_ref, b_ref, o_ref, *,
                            feat_block, feat_total, mask_features):
    """One (row-tile, feature-tile) grid step.

    x_ref: (block_rows, feat_block)  input tile (any float dtype, cast to f32)
    w_ref: (1, feat_block)           fc1 weight slice (f32)
    b_ref: (1, 1)                    fc1 bias scalar in SMEM (f32)
    o_ref: (1, 1, block_rows)        lane-dense output row; resident across the feature axis
    """
    k = pl.program_id(1)

    @pl.when(k == 0)
    def _init():
        o_ref[...] = jnp.zeros_like(o_ref)

    x = x_ref[...].astype(jnp.float32)          # (block_rows, feat_block)
    w = w_ref[...].astype(jnp.float32)          # (1, feat_block), broadcasts over rows
    prod = x * w                                # VPU elementwise
    if mask_features:
        # Ragged last feature tile: zero out lanes beyond the true feature dim so the
        # garbage in the padded part of the VMEM buffer cannot corrupt the row sums.
        col = k * feat_block + jax.lax.broadcasted_iota(jnp.int32, prod.shape, 1)
        prod = jnp.where(col < feat_total, prod, 0.0)

    partial = jnp.sum(prod, axis=-1)            # (block_rows,) cross-lane reduce (XLU)
    o_ref[...] += partial[None, None, :]        # accumulate into resident, lane-dense row

    @pl.when(k == pl.num_programs(1) - 1)
    def _finalize():
        z = o_ref[...] + b_ref[0, 0]            # scalar bias from SMEM
        # sigmoid written explicitly (exp + div lower cleanly on every generation).
        o_ref[...] = 1.0 / (1.0 + jnp.exp(-z))


def _choose_tiles(B, D, itemsize, block_rows, block_features):
    """Pick (block_rows, block_features) honoring layout + VMEM constraints."""
    # <= 6 MiB per x tile: 2x double-buffered x + weight + output stays well under
    # v5e's 16 MiB scoped-VMEM default (and trivially under v6e/v7x defaults).
    budget = 6 * 1024 * 1024

    if block_rows is None:
        if B <= 8:
            block_rows = B                                  # block dim == full dim
        else:
            # Aim for >= 4 grid steps (>= 2 per v7x TensorCore) while keeping tiles in the
            # 8..512-row range where the HBM roofline is already ~saturated.
            block_rows = min(512, max(8, (B // 4) // 8 * 8))
    block_rows = min(block_rows, B)
    if block_rows < B:                                      # must be a multiple of 8 unless == B
        block_rows = max(8, (block_rows // 8) * 8)

    if block_features is None:
        if block_rows * D * itemsize <= budget:
            block_features = D
        else:
            # Shrink rows first; only if even 8 rows x full D overflows the budget do we
            # tile the feature dim (extremely wide D guard, esp. relevant on v7x VMEM).
            br = (budget // (D * itemsize)) // 8 * 8
            if br >= 8:
                block_rows = min(block_rows, br)
                block_features = D
            else:
                per_col_bytes = block_rows * itemsize + 4   # x column + f32 weight element
                block_features = max(128, (budget // per_col_bytes) // 128 * 128)

    # Sanitize (also for explicit overrides): multiple of 128 unless == D.
    block_features = min(block_features, D)
    if block_features < D:
        bf = max(128, (block_features // 128) * 128)
        block_features = D if bf >= D else bf

    return block_rows, block_features


def head_classifier(x, w_row, b, *, block_rows=None, block_features=None, use_pallas=None):
    """sigmoid(x @ w_row.T + b), dropout as identity (eval mode).

    x:     (B, D) float32 or bfloat16
    w_row: (1, D) fc1.weight (PyTorch layout)
    b:     fc1.bias, any shape with one element
    Returns (B, 1) float32 probabilities.
    """
    B, D = x.shape
    assert w_row.shape == (1, D)
    w_row = w_row.astype(jnp.float32)
    b = jnp.asarray(b, jnp.float32).reshape(1, 1)

    itemsize = x.dtype.itemsize
    if use_pallas is None:
        # Tiny problems: kernel dispatch + per-grid-step overhead dwarfs the work.
        use_pallas = (B * D * itemsize) >= (1 << 20)
    if not use_pallas:
        logits = jnp.sum(x.astype(jnp.float32) * w_row, axis=-1, keepdims=True) + b[0, 0]
        return jax.nn.sigmoid(logits)

    block_rows, block_features = _choose_tiles(B, D, itemsize, block_rows, block_features)
    num_row_tiles = pl.cdiv(B, block_rows)
    num_feat_tiles = pl.cdiv(D, block_features)
    mask_features = (block_features < D) and (D % block_features != 0)

    kernel = functools.partial(
        _head_classifier_kernel,
        feat_block=block_features, feat_total=D, mask_features=mask_features)

    out = pl.pallas_call(
        kernel,
        # Lane-dense output slab: one (1, block_rows) row per row tile.
        out_shape=jax.ShapeDtypeStruct((num_row_tiles, 1, block_rows), jnp.float32),
        grid=(num_row_tiles, num_feat_tiles),
        in_specs=[
            pl.BlockSpec((block_rows, block_features), lambda i, k: (i, k)),   # x tiles
            pl.BlockSpec((1, block_features), lambda i, k: (0, k)),            # weight slice
            pl.BlockSpec(memory_space=pltpu.MemorySpace.SMEM),                 # bias scalar
        ],
        out_specs=pl.BlockSpec((1, 1, block_rows), lambda i, k: (i, 0, 0)),
        compiler_params=pltpu.CompilerParams(
            dimension_semantics=("parallel", "arbitrary")),
        cost_estimate=pl.CostEstimate(
            flops=2 * B * D,
            transcendentals=B,
            bytes_accessed=B * D * itemsize + D * 4 + B * 4),
    )(x, w_row, b)

    # Rows beyond B in the last ragged tile hold garbage logits (never used); slice them off.
    return out.reshape(-1)[:B].reshape(B, 1)


def init_params(key, stack_output_dimension):
    # Deterministic init mimicking torch.nn.Linear default:
    # U(-1/sqrt(fan_in), 1/sqrt(fan_in)) for weight and bias; weight kept in (1, D) layout.
    kw, kb = jax.random.split(key)
    bound = 1.0 / jnp.sqrt(jnp.float32(stack_output_dimension))
    w_row = jax.random.uniform(
        kw, (1, stack_output_dimension), jnp.float32, -bound, bound)
    b = jax.random.uniform(kb, (1, 1), jnp.float32, -bound, bound)
    return w_row, b


def _reference(x, w_row, b):
    logits = jnp.sum(x.astype(jnp.float32) * w_row.astype(jnp.float32),
                     axis=-1, keepdims=True) + b[0, 0]
    return jax.nn.sigmoid(logits)


if __name__ == "__main__":
    key = jax.random.PRNGKey(0)
    k_x1, k_x2, k_x3, k_p = jax.random.split(key, 4)

    # Case 1: module-scale tiny shape (batch=2, hidden=32), f32. Forced through the kernel
    # (the wrapper's auto heuristic would otherwise use plain XLA for something this small).
    D1 = 32
    x1 = jax.random.normal(k_x1, (2, D1), jnp.float32)
    w1, b1 = init_params(k_p, D1)
    out1 = jax.block_until_ready(head_classifier(x1, w1, b1, use_pallas=True))
    assert out1.shape == (2, 1)
    assert jnp.allclose(out1, _reference(x1, w1, b1), atol=1e-5)

    # Case 2: bf16 input, multi-step batch grid with a ragged last row tile.
    B2, D2 = 300, 256
    x2 = jax.random.normal(k_x2, (B2, D2), jnp.float32).astype(jnp.bfloat16)
    w2, b2 = init_params(k_p, D2)
    out2 = jax.block_until_ready(head_classifier(x2, w2, b2, use_pallas=True))
    assert out2.shape == (B2, 1)
    assert jnp.allclose(out2, _reference(x2, w2, b2), atol=1e-5)

    # Case 3: forced feature-axis tiling with a ragged (masked) last feature tile.
    B3, D3 = 40, 200
    x3 = jax.random.normal(k_x3, (B3, D3), jnp.float32).astype(jnp.bfloat16)
    w3, b3 = init_params(k_p, D3)
    out3 = jax.block_until_ready(
        head_classifier(x3, w3, b3, block_rows=16, block_features=128, use_pallas=True))
    assert out3.shape == (B3, 1)
    assert jnp.allclose(out3, _reference(x3, w3, b3), atol=1e-5)

    print("KERNEL_OK")
</pallas_src>

<mosaic_0001>
module attributes {stable_mosaic.version = 11 : i64} {
  func.func @_head_classifier_kernel(%arg0: i32, %arg1: i32, %arg2: memref<2x32xf32, #tpu.memory_space<vmem>>, %arg3: memref<1x32xf32, #tpu.memory_space<vmem>>, %arg4: memref<1x1xf32, #tpu.memory_space<smem>>, %arg5: memref<1x1x2xf32, #tpu.memory_space<vmem>>) attributes {dimension_semantics = [#tpu.dimension_semantics<parallel>, #tpu.dimension_semantics<arbitrary>], iteration_bounds = array<i64: 1, 1>, scalar_prefetch = 0 : i64, scratch_operands = 0 : i64, tpu.core_type = #tpu.core_type<tc>, window_params = [{transform_indices = @transform_0, window_bounds = array<i64: 2, 32>}, {transform_indices = @transform_1, window_bounds = array<i64: 1, 32>}, {transform_indices = @transform_2, window_bounds = array<i64: 1, 1>}, {transform_indices = @transform_3, window_bounds = array<i64: 1, 1, 2>}]} {
    %c0_i32 = arith.constant 0 : i32
    %0 = arith.cmpi eq, %arg1, %c0_i32 : i32
    %1 = arith.extui %0 : i1 to i32
    %c0_i32_0 = arith.constant 0 : i32
    %2 = arith.cmpi ne, %1, %c0_i32_0 : i32
    scf.if %2 {
      %cst_12 = arith.constant 0.000000e+00 : f32
      %15 = vector.broadcast %cst_12 : f32 to vector<1x1x2xf32>
      %c0_13 = arith.constant 0 : index
      %c0_14 = arith.constant 0 : index
      %c0_15 = arith.constant 0 : index
      %16 = vector.load %arg5[%c0_13, %c0_14, %c0_15] : memref<1x1x2xf32, #tpu.memory_space<vmem>>, vector<1x1x2xf32>
      tpu.vector_store %arg5[%c0_13, %c0_14, %c0_15], %15 {strides = array<i32>} : memref<1x1x2xf32, #tpu.memory_space<vmem>>, vector<1x1x2xf32>,
    } else {
    }
    %c0 = arith.constant 0 : index
    %c0_1 = arith.constant 0 : index
    %3 = vector.load %arg2[%c0, %c0_1] : memref<2x32xf32, #tpu.memory_space<vmem>>, vector<2x32xf32>
    %c0_2 = arith.constant 0 : index
    %c0_3 = arith.constant 0 : index
    %4 = vector.load %arg3[%c0_2, %c0_3] : memref<1x32xf32, #tpu.memory_space<vmem>>, vector<1x32xf32>
    %5 = vector.broadcast %4 : vector<1x32xf32> to vector<2x32xf32>
    %6 = arith.mulf %3, %5 : vector<2x32xf32>
    %cst = arith.constant dense<0.000000e+00> : vector<2xf32>
    %7 = vector.multi_reduction <add>, %6, %cst [1] : vector<2x32xf32> to vector<2xf32>
    %c0_4 = arith.constant 0 : index
    %c0_5 = arith.constant 0 : index
    %c0_6 = arith.constant 0 : index
    %8 = vector.load %arg5[%c0_4, %c0_5, %c0_6] : memref<1x1x2xf32, #tpu.memory_space<vmem>>, vector<1x1x2xf32>
    %9 = vector.shape_cast %7 : vector<2xf32> to vector<1x1x2xf32>
    %10 = arith.addf %8, %9 : vector<1x1x2xf32>
    %c0_7 = arith.constant 0 : index
    %c0_8 = arith.constant 0 : index
    %c0_9 = arith.constant 0 : index
    %11 = vector.load %arg5[%c0_7, %c0_8, %c0_9] : memref<1x1x2xf32, #tpu.memory_space<vmem>>, vector<1x1x2xf32>
    tpu.vector_store %arg5[%c0_7, %c0_8, %c0_9], %10 {strides = array<i32>} : memref<1x1x2xf32, #tpu.memory_space<vmem>>, vector<1x1x2xf32>,
    %c0_i32_10 = arith.constant 0 : i32
    %12 = arith.cmpi eq, %arg1, %c0_i32_10 : i32
    %13 = arith.extui %12 : i1 to i32
    %c0_i32_11 = arith.constant 0 : i32
    %14 = arith.cmpi ne, %13, %c0_i32_11 : i32
    scf.if %14 {
      %c0_12 = arith.constant 0 : index
      %c0_13 = arith.constant 0 : index
      %c0_14 = arith.constant 0 : index
      %15 = vector.load %arg5[%c0_12, %c0_13, %c0_14] : memref<1x1x2xf32, #tpu.memory_space<vmem>>, vector<1x1x2xf32>
      %c0_15 = arith.constant 0 : index
      %c0_16 = arith.constant 0 : index
      %16 = memref.load %arg4[%c0_15, %c0_16] : memref<1x1xf32, #tpu.memory_space<smem>>
      %17 = vector.broadcast %16 : f32 to vector<1x1x2xf32>
      %18 = arith.addf %15, %17 : vector<1x1x2xf32>
      %cst_17 = arith.constant 0.000000e+00 : f32
      %19 = vector.broadcast %cst_17 : f32 to vector<1x1x2xf32>
      %20 = arith.subf %19, %18 : vector<1x1x2xf32>
      %21 = math.exp %20 : vector<1x1x2xf32>
      %cst_18 = arith.constant 1.000000e+00 : f32
      %22 = vector.broadcast %cst_18 : f32 to vector<1x1x2xf32>
      %23 = arith.addf %22, %21 : vector<1x1x2xf32>
      %cst_19 = arith.constant 1.000000e+00 : f32
      %24 = vector.broadcast %cst_19 : f32 to vector<1x1x2xf32>
      %25 = arith.divf %24, %23 : vector<1x1x2xf32>
      %c0_20 = arith.constant 0 : index
      %c0_21 = arith.constant 0 : index
      %c0_22 = arith.constant 0 : index
      %26 = vector.load %arg5[%c0_20, %c0_21, %c0_22] : memref<1x1x2xf32, #tpu.memory_space<vmem>>, vector<1x1x2xf32>
      tpu.vector_store %arg5[%c0_20, %c0_21, %c0_22], %25 {strides = array<i32>} : memref<1x1x2xf32, #tpu.memory_space<vmem>>, vector<1x1x2xf32>,
    } else {
    }
    return
  }
  func.func @transform_0(%arg0: i32, %arg1: i32) -> (i32, i32) {
    %c0_i32 = arith.constant 0 : i32
    return %arg0, %arg1 : i32, i32
  }
  func.func @transform_1(%arg0: i32, %arg1: i32) -> (i32, i32) {
    %c0_i32 = arith.constant 0 : i32
    %c0_i32_0 = arith.constant 0 : i32
    return %c0_i32, %arg1 : i32, i32
  }
  func.func @transform_2(%arg0: i32, %arg1: i32) -> (i32, i32) {
    %c0_i32 = arith.constant 0 : i32
    %c0_i32_0 = arith.constant 0 : i32
    %c0_i32_1 = arith.constant 0 : i32
    return %c0_i32, %c0_i32_0 : i32, i32
  }
  func.func @transform_3(%arg0: i32, %arg1: i32) -> (i32, i32, i32) {
    %c0_i32 = arith.constant 0 : i32
    %c0_i32_0 = arith.constant 0 : i32
    %c0_i32_1 = arith.constant 0 : i32
    return %arg0, %c0_i32, %c0_i32_0 : i32, i32, i32
  }
}

</mosaic_0001>

<llo_original>
// kernel: tpu_custom_call.1
$region0: #{tpu_custom_call.1}
  #allocation0 [shape = 'u32[]', space=smem, size = 0x4, offset = 0x4, fixed_abs, tag = 'smem constant byte address 0x4 - core index']
  #allocation1 [shape = 'u32[144,128]{1,0:T(1,128)}', space=vmem, size = 0x12000, scoped, tag = 'internal scratch']
  #allocation2 [shape = 'f32[1,1]{1,0:T(1,128)S(6)}', space=smem, size = 0x200, scoped, tag = 'scoped memory for tpu_custom_call.1']
  %s0 = inlined_call_operand.vmem [shape: f32[2,32], index: 0, kind: input, shape index: {}]
  %s1 = inlined_call_operand.vmem [shape: f32[1,32], index: 1, kind: input, shape index: {}]
  %s2 = inlined_call_operand.<no memory space> [shape: f32[1,1], index: 2, kind: input, shape index: {}]
  %s3 = inlined_call_operand.hbm [shape: f32[1,1,2], index: 3, kind: output, shape index: {}]
  %s4 = sld [smem:[#allocation0]]
  $region30: #{tpu_custom_call.1} parent=0
    _
  %s6 = ssub.s32 1, %s4
  %s7 = scalar_select 0, %s6, %s4
  %8 = sst [smem:[#allocation2]] %s2
  $region1: #{tpu_custom_call.1} parent=0
    #allocation3 [shape = 'u8[512]{0}', space=vmem, size = 0x400, scoped, tag = 'output window, operand 0, single buffered']
    #allocation4 [shape = 's32[1]{0}', space=sflag, size = 0x4, scoped, tag = 'scoped memory for tpu_custom_call.1']
    %9 = vsyncpa [#allocation4], 0
    // Predicated region
    $region2: #{tpu_custom_call.1} parent=1 // pred_check
      _
    $region3: #{tpu_custom_call.1} parent=1 // pred_check_branch
      %11 = sbr.rel (0) target = $region5
    $region4: #{tpu_custom_call.1} parent=1 // pred_region
      _
    $region5: #{tpu_custom_call.1} parent=1 // pred_fallthru
      _
    // Predicated region
    $region6: #{tpu_custom_call.1} parent=1 // pred_check
      _
    $region7: #{tpu_custom_call.1} parent=1 // pred_check_branch
      %13 = sbr.rel (0) target = $region9
    $region8: #{tpu_custom_call.1} parent=1 // pred_region
      _
    $region9: #{tpu_custom_call.1} parent=1 // pred_fallthru
      _
    // Predicated region
    $region10: #{tpu_custom_call.1} parent=1 // pred_check
      _
    $region11: #{tpu_custom_call.1} parent=1 // pred_check_branch
      %15 = sbr.rel (0) target = $region13
    $region12: #{tpu_custom_call.1} parent=1 // pred_region
      _
    $region13: #{tpu_custom_call.1} parent=1 // pred_fallthru
      _
    %p16 = scmp.eq.s32.totalorder 0, 0
    // Predicated region
    $region14: #{tpu_custom_call.1} parent=1 // pred_check
      %p17 = pneg %p16
    $region15: #{tpu_custom_call.1} parent=1 // pred_check_branch
      %19 = sbr.rel (%p17) target = $region17
    $region16: #{tpu_custom_call.1} parent=1 // pred_region
      %vm20 = vcmask 8192
      %21 = vst.msk [vmem:[#allocation3] sm:$0x1] %vm20, 0.0
    $region17: #{tpu_custom_call.1} parent=1 // pred_fallthru
      _
    %v22 = vld [vmem:[%s0] sm:$0x3]
    %v23 = vld [vmem:[%s1] sm:$0x1]
    %v25 = vlaneseq
    %v26 = vshrl.u32 %v25, 7
    %v27 = vsub.s32 0, %v26
    %v28 = vrot.slane %v23, %v27
    %v30 = vmul.f32 %v22, %v28
    %vm31 = vcmask 254976
    %v32 = vsel %vm31, %v30, 0.0
    %33 = vadd.xlane.f32.xlu0 %v32
    %v34 = vpop.xlane.xlu0 %33
    %v35 = vld [vmem:[#allocation3] sm:$0x1]
    %v37 = vlaneseq
    %v38 = vshrl.u32 %v37, 7
    %v39 = vsub.s32 0, %v38
    %v40 = vrot.slane %v34, %v39
    %v41 = vlaneseq
    %v42 = vshrl.u32 %v41, 7
    %v43 = vsub.s32 1, %v42
    %v44 = vrot.slane %v34, %v43
    %v45 = vcombine.low %v40, %v44
    %v47 = vunpack.c.l.s4 1966171168
    %v48 = vunpack.c.0.s8 %v47
    %v49 = vlaneseq
    %v50 = vshrl.u32 %v49, 7
    %v51 = vsub.s32 %v48, %v50
    %v52 = vrot.slane %v45, %v51
    %v54 = vunpack.c.l.s4 1966171168
    %v55 = vunpack.c.0.s8 %v54
    %v56 = vlaneseq
    %v57 = vshrl.u32 %v56, 7
    %v58 = vsub.s32 %v55, %v57
    %v59 = vrot.slane %v52, %v58
    %60 = vset.pattern.permute.xlu0 0
    %61 = vperm.xlu0 %60, %v59
    %v62 = vpop.permute.xlu0 %61
    %v63 = vlaneseq
    %v64 = vand.u32 %v63, 127
    %v65 = vlaneseq
    %v66 = vshrl.u32 %v65, 7
    %v67 = vsub.s32 %v64, %v66
    %v68 = vrot.slane %v62, %v67
    %v70 = vunpack.c.l.s4 1966171168
    %v71 = vunpack.c.0.s8 %v70
    %v72 = vlaneseq
    %v73 = vshrl.u32 %v72, 7
    %v74 = vsub.s32 %v71, %v73
    %v75 = vrot.slane %v68, %v74
    %v77 = vunpack.c.l.s4 1966171168
    %v78 = vunpack.c.0.s8 %v77
    %v79 = vlaneseq
    %v80 = vshrl.u32 %v79, 7
    %v81 = vsub.s32 %v78, %v80
    %v82 = vrot.slane %v75, %v81
    %v84 = vadd.f32 %v35, %v82
    %vm85 = vcmask 8192
    %86 = vst.msk [vmem:[#allocation3] sm:$0x1] %vm85, %v84
    // Predicated region
    $region18: #{tpu_custom_call.1} parent=1 // pred_check
      %p87 = pneg %p16
    $region19: #{tpu_custom_call.1} parent=1 // pred_check_branch
      %89 = sbr.rel (%p87) target = $region21
    $region20: #{tpu_custom_call.1} parent=1 // pred_region
      %v90 = vld [vmem:[#allocation3] sm:$0x1]
      %s91 = sld [smem:[#allocation2]]
      %v92 = vstv %s91
      %v93 = vadd.f32 %v90, %v92
      %v94 = vsub.f32 0.0, %v93
      %v95 = vmul.f32 %v94, 1.442695
      %v96 = vpow.pop %v95
      %v97 = vadd.f32 %v96, 1.0
      %v98 = vrcp.pop %v97
      %v99 = vmul.f32 1.0, %v98
      %100 = vst.msk [vmem:[#allocation3] sm:$0x1] %vm85, %v99
    $region21: #{tpu_custom_call.1} parent=1 // pred_fallthru
      _
    // Predicated region
    $region22: #{tpu_custom_call.1} parent=1 // pred_check
      _
    $region23: #{tpu_custom_call.1} parent=1 // pred_check_branch
      %102 = sbr.rel (0) target = $region25
    $region24: #{tpu_custom_call.1} parent=1 // pred_region
      %s104 = ssub.s32 16, 16
      %105 = vsyncadd [#allocation4], %s104
      %s107 = sshll.u32 [#allocation3], 4
      %s108 = int_to_ptr.vmem [resolvable:$true] %s107
      %110 = dma.vmem_to_hbm [thread:$0]  %s108, 16, %s3, [#allocation4]
    $region25: #{tpu_custom_call.1} parent=1 // pred_fallthru
      _
    // Predicated region
    $region26: #{tpu_custom_call.1} parent=1 // pred_check
      _
    $region27: #{tpu_custom_call.1} parent=1 // pred_check_branch
      %112 = sbr.rel (0) target = $region29
    $region28: #{tpu_custom_call.1} parent=1 // pred_region
      %113 = dma.done [#allocation4], 16
    $region29: #{tpu_custom_call.1} parent=1 // pred_fallthru
      _
    %114 = vsyncpa [#allocation4], 1

</llo_original>
